<compile_context>
chip_gen: v7x
topology: tpu7x:2x2x1
jax: 0.10.0
libtpu: 0.0.40
codegen_flags: <defaults>
</compile_context>

<pallas_src>
import functools

import jax
import jax.numpy as jnp
from jax.experimental import pallas as pl
from jax.experimental.pallas import tpu as pltpu


def _embedding_layernorm_kernel(x_ref, tok_ref, gamma_ref, beta_ref, o_ref, *, eps):
    # x_ref:     (BB, S, H)  batch tile
    # tok_ref:   (S, H)      token-type embedding rows (resident, same every step)
    # gamma_ref: (1, H)      LayerNorm weight (resident)
    # beta_ref:  (1, H)      LayerNorm bias   (resident)
    # o_ref:     (BB, S, H)
    x = x_ref[...].astype(jnp.float32)            # (BB, S, H)
    tok = tok_ref[...].astype(jnp.float32)        # (S, H)
    e = x + tok[None, :, :]                       # broadcast add over batch

    h = e.shape[-1]
    inv_h = jnp.float32(1.0 / h)

    # Single-pass statistics: sum and sum-of-squares over the hidden axis.
    s1 = jnp.sum(e, axis=-1, keepdims=True)
    s2 = jnp.sum(e * e, axis=-1, keepdims=True)
    mean = s1 * inv_h
    var = s2 * inv_h - mean * mean
    var = jnp.maximum(var, 0.0)                   # guard E[x^2]-mean^2 cancellation
    inv = jax.lax.rsqrt(var + eps)                # EUP rsqrt (free slot)

    gamma = gamma_ref[...].astype(jnp.float32)    # (1, H)
    beta = beta_ref[...].astype(jnp.float32)      # (1, H)
    out = (e - mean) * inv * gamma[None, :, :] + beta[None, :, :]

    # Dropout: inference mode -> identity.
    o_ref[...] = out.astype(o_ref.dtype)


def _pick_batch_block(B, S, H, itemsize):
    """Choose BB (batch elements per block): big enough to amortize per-step
    overhead (>= ~512-1024 sublane rows), small enough that double-buffered
    in+out blocks fit v7x's 32 MiB scoped VMEM (~2 MiB per block)."""
    target_rows = 1024                      # BB * S rows per block target
    max_block_bytes = 2 * 1024 * 1024       # ~2 MiB per block
    bb = max(1, target_rows // max(S, 1))
    bb = min(bb, max(1, max_block_bytes // max(S * H * itemsize, 1)))
    bb = min(bb, B)
    # Keep >= 2 grid steps when B > 1 so both v7x TensorCores get a share.
    if B > 1 and bb >= B:
        bb = pl.cdiv(B, 2)
    return max(bb, 1)


def graph_transformer_embedding(input_embed, token_type_table, ln_weight, ln_bias,
                                *, max_adj, eps=1e-12):
    """input_embed: (B, S, H) with S == max_adj + 1."""
    B, S, H = input_embed.shape
    assert S == max_adj + 1
    dtype = input_embed.dtype

    # Glue: gather the 2-row embedding table into an (S, H) per-position table
    # (row 0 for position 0, row 1 for positions 1..max_adj).
    token_type_ids = jnp.concatenate(
        [jnp.zeros((1,), jnp.int32), jnp.ones((max_adj,), jnp.int32)]
    )
    tok_emb = token_type_table[token_type_ids].astype(dtype)   # (S, H)

    gamma = ln_weight.reshape(1, H)
    beta = ln_bias.reshape(1, H)

    bb = _pick_batch_block(B, S, H, jnp.dtype(dtype).itemsize)
    num_blocks = pl.cdiv(B, bb)
    b_pad = num_blocks * bb

    x = input_embed
    if b_pad != B:
        # Pad batch so every block is full; padded rows are computed and dropped.
        x = jnp.pad(x, ((0, b_pad - B), (0, 0), (0, 0)))

    kernel = functools.partial(_embedding_layernorm_kernel, eps=float(eps))

    out = pl.pallas_call(
        kernel,
        out_shape=jax.ShapeDtypeStruct((b_pad, S, H), dtype),
        grid_spec=pltpu.PrefetchScalarGridSpec(
            num_scalar_prefetch=0,
            grid=(num_blocks,),
            in_specs=[
                pl.BlockSpec((bb, S, H), lambda b: (b, 0, 0)),  # input tile
                pl.BlockSpec((S, H), lambda b: (0, 0)),         # tok emb (resident)
                pl.BlockSpec((1, H), lambda b: (0, 0)),         # gamma (resident)
                pl.BlockSpec((1, H), lambda b: (0, 0)),         # beta (resident)
            ],
            out_specs=pl.BlockSpec((bb, S, H), lambda b: (b, 0, 0)),
        ),
        compiler_params=pltpu.CompilerParams(
            dimension_semantics=("parallel",)
        ),
    )(x, tok_emb, gamma, beta)

    if b_pad != B:
        out = out[:B]
    return out


def reference(input_embed, token_type_table, ln_weight, ln_bias, *, max_adj, eps=1e-12):
    token_type_ids = jnp.concatenate(
        [jnp.zeros((1,), jnp.int32), jnp.ones((max_adj,), jnp.int32)]
    )
    tok_emb = token_type_table[token_type_ids]
    e = input_embed.astype(jnp.float32) + tok_emb.astype(jnp.float32)[None, :, :]
    mean = jnp.mean(e, axis=-1, keepdims=True)
    var = jnp.mean((e - mean) ** 2, axis=-1, keepdims=True)
    norm = (e - mean) / jnp.sqrt(var + eps)
    return (norm * ln_weight + ln_bias).astype(input_embed.dtype)


if __name__ == "__main__":
    # Config: hidden_size=128, max_adj=7 -> S=8, layer_norm_eps=1e-12, dropout (inference)
    B, max_adj, H = 2, 7, 128
    S = max_adj + 1
    eps = 1e-12

    key = jax.random.PRNGKey(0)
    k_x, k_emb = jax.random.split(key)

    input_embed = jax.random.normal(k_x, (B, S, H), dtype=jnp.float32)
    # nn.Embedding(2, H) weights ~ N(0, 1)
    token_type_table = jax.random.normal(k_emb, (2, H), dtype=jnp.float32)
    # nn.LayerNorm default init: weight=1, bias=0
    ln_weight = jnp.ones((H,), dtype=jnp.float32)
    ln_bias = jnp.zeros((H,), dtype=jnp.float32)

    out = graph_transformer_embedding(
        input_embed, token_type_table, ln_weight, ln_bias, max_adj=max_adj, eps=eps
    )
    out = jax.block_until_ready(out)

    ref = reference(
        input_embed, token_type_table, ln_weight, ln_bias, max_adj=max_adj, eps=eps
    )
    assert out.shape == (B, S, H)
    assert jnp.allclose(out, ref, atol=1e-5, rtol=1e-5)

    # Also exercise a larger batch (multi-block path, non-divisible batch) to
    # make sure the batched tiling + padding path is correct.
    B2 = 37
    x2 = jax.random.normal(jax.random.PRNGKey(1), (B2, S, H), dtype=jnp.float32)
    out2 = jax.block_until_ready(
        graph_transformer_embedding(
            x2, token_type_table, ln_weight, ln_bias, max_adj=max_adj, eps=eps
        )
    )
    ref2 = reference(x2, token_type_table, ln_weight, ln_bias, max_adj=max_adj, eps=eps)
    assert out2.shape == (B2, S, H)
    assert jnp.allclose(out2, ref2, atol=1e-5, rtol=1e-5)

    print("KERNEL_OK")
</pallas_src>

<mosaic_0001>
module attributes {stable_mosaic.version = 11 : i64} {
  func.func @_embedding_layernorm_kernel(%arg0: i32, %arg1: memref<1x8x128xf32, #tpu.memory_space<vmem>>, %arg2: memref<8x128xf32, #tpu.memory_space<vmem>>, %arg3: memref<1x128xf32, #tpu.memory_space<vmem>>, %arg4: memref<1x128xf32, #tpu.memory_space<vmem>>, %arg5: memref<1x8x128xf32, #tpu.memory_space<vmem>>) attributes {dimension_semantics = [#tpu.dimension_semantics<parallel>], iteration_bounds = array<i64: 2>, scalar_prefetch = 0 : i64, scratch_operands = 0 : i64, tpu.core_type = #tpu.core_type<tc>, window_params = [{transform_indices = @transform_0, window_bounds = array<i64: 1, 8, 128>}, {pipeline_mode = #tpu.pipeline_mode<synchronous>, transform_indices = @transform_1, window_bounds = array<i64: 8, 128>}, {pipeline_mode = #tpu.pipeline_mode<synchronous>, transform_indices = @transform_2, window_bounds = array<i64: 1, 128>}, {pipeline_mode = #tpu.pipeline_mode<synchronous>, transform_indices = @transform_3, window_bounds = array<i64: 1, 128>}, {transform_indices = @transform_4, window_bounds = array<i64: 1, 8, 128>}]} {
    %c0 = arith.constant 0 : index
    %c0_0 = arith.constant 0 : index
    %c0_1 = arith.constant 0 : index
    %0 = vector.load %arg1[%c0, %c0_0, %c0_1] : memref<1x8x128xf32, #tpu.memory_space<vmem>>, vector<1x8x128xf32>
    %c0_2 = arith.constant 0 : index
    %c0_3 = arith.constant 0 : index
    %1 = vector.load %arg2[%c0_2, %c0_3] : memref<8x128xf32, #tpu.memory_space<vmem>>, vector<8x128xf32>
    %2 = vector.shape_cast %1 : vector<8x128xf32> to vector<1x8x128xf32>
    %3 = arith.addf %0, %2 : vector<1x8x128xf32>
    %cst = arith.constant dense<0.000000e+00> : vector<1x8xf32>
    %4 = vector.multi_reduction <add>, %3, %cst [2] : vector<1x8x128xf32> to vector<1x8xf32>
    %5 = vector.shape_cast %4 : vector<1x8xf32> to vector<1x8x1xf32>
    %6 = arith.mulf %3, %3 : vector<1x8x128xf32>
    %cst_4 = arith.constant dense<0.000000e+00> : vector<1x8xf32>
    %7 = vector.multi_reduction <add>, %6, %cst_4 [2] : vector<1x8x128xf32> to vector<1x8xf32>
    %8 = vector.shape_cast %7 : vector<1x8xf32> to vector<1x8x1xf32>
    %cst_5 = arith.constant 7.812500e-03 : f32
    %9 = vector.broadcast %cst_5 : f32 to vector<1x8x1xf32>
    %10 = arith.mulf %5, %9 : vector<1x8x1xf32>
    %cst_6 = arith.constant 7.812500e-03 : f32
    %11 = vector.broadcast %cst_6 : f32 to vector<1x8x1xf32>
    %12 = arith.mulf %8, %11 : vector<1x8x1xf32>
    %13 = arith.mulf %10, %10 : vector<1x8x1xf32>
    %14 = arith.subf %12, %13 : vector<1x8x1xf32>
    %cst_7 = arith.constant 0.000000e+00 : f32
    %15 = vector.broadcast %cst_7 : f32 to vector<1x8x1xf32>
    %16 = arith.maximumf %14, %15 : vector<1x8x1xf32>
    %cst_8 = arith.constant 9.99999996E-13 : f32
    %17 = vector.broadcast %cst_8 : f32 to vector<1x8x1xf32>
    %18 = arith.addf %16, %17 : vector<1x8x1xf32>
    %19 = math.rsqrt %18 : vector<1x8x1xf32>
    %c0_9 = arith.constant 0 : index
    %c0_10 = arith.constant 0 : index
    %20 = vector.load %arg3[%c0_9, %c0_10] : memref<1x128xf32, #tpu.memory_space<vmem>>, vector<1x128xf32>
    %c0_11 = arith.constant 0 : index
    %c0_12 = arith.constant 0 : index
    %21 = vector.load %arg4[%c0_11, %c0_12] : memref<1x128xf32, #tpu.memory_space<vmem>>, vector<1x128xf32>
    %22 = vector.broadcast %10 : vector<1x8x1xf32> to vector<1x8x128xf32>
    %23 = arith.subf %3, %22 : vector<1x8x128xf32>
    %24 = vector.broadcast %19 : vector<1x8x1xf32> to vector<1x8x128xf32>
    %25 = arith.mulf %23, %24 : vector<1x8x128xf32>
    %26 = vector.shape_cast %20 : vector<1x128xf32> to vector<1x1x128xf32>
    %27 = vector.broadcast %26 : vector<1x1x128xf32> to vector<1x8x128xf32>
    %28 = arith.mulf %25, %27 : vector<1x8x128xf32>
    %29 = vector.shape_cast %21 : vector<1x128xf32> to vector<1x1x128xf32>
    %30 = vector.broadcast %29 : vector<1x1x128xf32> to vector<1x8x128xf32>
    %31 = arith.addf %28, %30 : vector<1x8x128xf32>
    %c0_13 = arith.constant 0 : index
    %c0_14 = arith.constant 0 : index
    %c0_15 = arith.constant 0 : index
    %32 = vector.load %arg5[%c0_13, %c0_14, %c0_15] : memref<1x8x128xf32, #tpu.memory_space<vmem>>, vector<1x8x128xf32>
    tpu.vector_store %arg5[%c0_13, %c0_14, %c0_15], %31 {strides = array<i32>} : memref<1x8x128xf32, #tpu.memory_space<vmem>>, vector<1x8x128xf32>,
    return
  }
  func.func @transform_0(%arg0: i32) -> (i32, i32, i32) {
    %c0_i32 = arith.constant 0 : i32
    %c0_i32_0 = arith.constant 0 : i32
    %c0_i32_1 = arith.constant 0 : i32
    return %arg0, %c0_i32, %c0_i32_0 : i32, i32, i32
  }
  func.func @transform_1(%arg0: i32) -> (i32, i32) {
    %c0_i32 = arith.constant 0 : i32
    %c0_i32_0 = arith.constant 0 : i32
    %c0_i32_1 = arith.constant 0 : i32
    return %c0_i32, %c0_i32_0 : i32, i32
  }
  func.func @transform_2(%arg0: i32) -> (i32, i32) {
    %c0_i32 = arith.constant 0 : i32
    %c0_i32_0 = arith.constant 0 : i32
    %c0_i32_1 = arith.constant 0 : i32
    return %c0_i32, %c0_i32_0 : i32, i32
  }
  func.func @transform_3(%arg0: i32) -> (i32, i32) {
    %c0_i32 = arith.constant 0 : i32
    %c0_i32_0 = arith.constant 0 : i32
    %c0_i32_1 = arith.constant 0 : i32
    return %c0_i32, %c0_i32_0 : i32, i32
  }
  func.func @transform_4(%arg0: i32) -> (i32, i32, i32) {
    %c0_i32 = arith.constant 0 : i32
    %c0_i32_0 = arith.constant 0 : i32
    %c0_i32_1 = arith.constant 0 : i32
    return %arg0, %c0_i32, %c0_i32_0 : i32, i32, i32
  }
}

</mosaic_0001>

<llo_original>
// kernel: tpu_custom_call.1
$region0: #{tpu_custom_call.1}
  #allocation0 [shape = 'u32[]', space=smem, size = 0x4, offset = 0x4, fixed_abs, tag = 'smem constant byte address 0x4 - core index']
  #allocation1 [shape = 'u32[144,128]{1,0:T(1,128)}', space=vmem, size = 0x12000, scoped, tag = 'internal scratch']
  %s0 = inlined_call_operand.hbm [shape: f32[2,8,128], index: 0, kind: input, shape index: {}]
  %s1 = inlined_call_operand.hbm [shape: f32[8,128], index: 1, kind: input, shape index: {}]
  %s2 = inlined_call_operand.vmem [shape: f32[1,128], index: 2, kind: input, shape index: {}]
  %s3 = inlined_call_operand.vmem [shape: f32[1,128], index: 3, kind: input, shape index: {}]
  %s4 = inlined_call_operand.hbm [shape: f32[2,8,128], index: 4, kind: output, shape index: {}]
  %s5 = sld [smem:[#allocation0]]
  $region57: #{tpu_custom_call.1} parent=0
    _
  %s7 = ssub.s32 1, %s5
  %s8 = scalar_select 0, %s7, %s5
  $region1: #{tpu_custom_call.1} parent=0
    #allocation2 [shape = 'u8[8192]{0}', space=vmem, size = 0x2000, scoped, tag = 'input window, operand 0']
    #allocation3 [shape = 's32[2]{0}', space=sflag, size = 0x8, scoped, tag = 'scoped memory for tpu_custom_call.1']
    #allocation4 [shape = 's32[2]{0}', space=sflag, size = 0x8, scoped, tag = 'scoped memory for tpu_custom_call.1']
    #allocation5 [shape = 'u8[4096]{0}', space=vmem, size = 0x1000, scoped, tag = 'input window, operand 1, single buffered']
    #allocation6 [shape = 's32[1]{0}', space=sflag, size = 0x4, scoped, tag = 'scoped memory for tpu_custom_call.1']
    #allocation7 [shape = 'u8[8192]{0}', space=vmem, size = 0x2000, scoped, tag = 'output window, operand 0']
    %9 = vsyncpa [#allocation3], 0
    %s10 = scalar_lea.sflag [#allocation3], 1
    %11 = vsyncpa %s10, 0
    %12 = vsyncpa [#allocation6], 0
    %13 = vsyncpa [#allocation4], 0
    %s14 = scalar_lea.sflag [#allocation4], 1
    %15 = vsyncpa %s14, 0
    loop: start=0, step=1, limit=4
    $region2: #{tpu_custom_call.1} parent=1 // loop_pre_header
      _
    $region3: #{tpu_custom_call.1} parent=1 // loop_header
      %s17 = sphi 0, %s21
      %p18 = scmp.ge.s32.totalorder %s17, 4
      %s27 = sphi 0, %s29
      %s30 = sphi 0, %s27
      %s31 = sphi 0, %s30
      %s47 = sphi 0, %s31
      %s51 = sphi 0, %s51
      %s53 = sphi 0, %s51
      %s54 = sphi 0, %s53
      %s68 = sphi 0, %s54
      %s72 = sphi 0, %s72
      %s74 = sphi 0, %s72
      %s75 = sphi 0, %s74
      %s89 = sphi 0, %s75
      %s93 = sphi 0, %s93
      %s95 = sphi 0, %s93
      %s96 = sphi 0, %s95
      %s110 = sphi 0, %s96
      %s116 = sphi 0, %s118
      %s119 = sphi 0, %s116
      %s120 = sphi 0, %s119
      %s136 = sphi 0, %s120
    $region4: #{tpu_custom_call.1} parent=1 // loop_header_branch
      %20 = sbr.rel (%p18) target = $region8
    $region5: #{tpu_custom_call.1} parent=1 // loop_body
      %s22 = ssub.s32 %s17, 1
      %s23 = ssub.s32 %s17, 2
      %s24 = sadd.s32 %s17, 1
      %s25 = ssub.s32 %s17, %s24
      %p26 = scmp.eq.s32.totalorder %s25, 0
      %s28 = sadd.s32 %s27, 1
      %s29 = scalar_select %p26, %s27, %s28
      %p32 = pneg %p26
      %p33 = scmp.eq.s32.totalorder %s17, 1
      %p34 = por %p32, %p33
      %p35 = scmp.ne.s32.totalorder %s27, %s30
      %p36 = scmp.eq.s32.totalorder %s17, 0
      %p37 = por %p35, %p36
      %p38 = scmp.ne.s32.totalorder %s27, %s30
      %p39 = scmp.eq.s32.totalorder %s22, 1
      %p40 = por %p38, %p39
      %p41 = scmp.ne.s32.totalorder %s30, %s31
      %p42 = scmp.eq.s32.totalorder %s22, 0
      %p43 = por %p41, %p42
      %p44 = scmp.ne.s32.totalorder %s30, %s31
      %p45 = scmp.eq.s32.totalorder %s23, 1
      %p46 = por %p44, %p45
      %p48 = scmp.ne.s32.totalorder %s31, %s47
      %p49 = scmp.eq.s32.totalorder %s23, 0
      %p50 = por %p48, %p49
      %s52 = sadd.s32 %s51, 1
      %p55 = scmp.eq.s32.totalorder %s17, 1
      %p56 = scmp.ne.s32.totalorder %s51, %s53
      %p57 = scmp.eq.s32.totalorder %s17, 0
      %p58 = por %p56, %p57
      %p59 = scmp.ne.s32.totalorder %s51, %s53
      %p60 = scmp.eq.s32.totalorder %s22, 1
      %p61 = por %p59, %p60
      %p62 = scmp.ne.s32.totalorder %s53, %s54
      %p63 = scmp.eq.s32.totalorder %s22, 0
      %p64 = por %p62, %p63
      %p65 = scmp.ne.s32.totalorder %s53, %s54
      %p66 = scmp.eq.s32.totalorder %s23, 1
      %p67 = por %p65, %p66
      %p69 = scmp.ne.s32.totalorder %s54, %s68
      %p70 = scmp.eq.s32.totalorder %s23, 0
      %p71 = por %p69, %p70
      %s73 = sadd.s32 %s72, 1
      %p76 = scmp.eq.s32.totalorder %s17, 1
      %p77 = scmp.ne.s32.totalorder %s72, %s74
      %p78 = scmp.eq.s32.totalorder %s17, 0
      %p79 = por %p77, %p78
      %p80 = scmp.ne.s32.totalorder %s72, %s74
      %p81 = scmp.eq.s32.totalorder %s22, 1
      %p82 = por %p80, %p81
      %p83 = scmp.ne.s32.totalorder %s74, %s75
      %p84 = scmp.eq.s32.totalorder %s22, 0
      %p85 = por %p83, %p84
      %p86 = scmp.ne.s32.totalorder %s74, %s75
      %p87 = scmp.eq.s32.totalorder %s23, 1
      %p88 = por %p86, %p87
      %p90 = scmp.ne.s32.totalorder %s75, %s89
      %p91 = scmp.eq.s32.totalorder %s23, 0
      %p92 = por %p90, %p91
      %s94 = sadd.s32 %s93, 1
      %p97 = scmp.eq.s32.totalorder %s17, 1
      %p98 = scmp.ne.s32.totalorder %s93, %s95
      %p99 = scmp.eq.s32.totalorder %s17, 0
      %p100 = por %p98, %p99
      %p101 = scmp.ne.s32.totalorder %s93, %s95
      %p102 = scmp.eq.s32.totalorder %s22, 1
      %p103 = por %p101, %p102
      %p104 = scmp.ne.s32.totalorder %s95, %s96
      %p105 = scmp.eq.s32.totalorder %s22, 0
      %p106 = por %p104, %p105
      %p107 = scmp.ne.s32.totalorder %s95, %s96
      %p108 = scmp.eq.s32.totalorder %s23, 1
      %p109 = por %p107, %p108
      %p111 = scmp.ne.s32.totalorder %s96, %s110
      %p112 = scmp.eq.s32.totalorder %s23, 0
      %p113 = por %p111, %p112
      %s114 = ssub.s32 %s17, %s24
      %p115 = scmp.eq.s32.totalorder %s114, 0
      %s117 = sadd.s32 %s116, 1
      %s118 = scalar_select %p115, %s116, %s117
      %p121 = pneg %p115
      %p122 = scmp.eq.s32.totalorder %s17, 1
      %p123 = por %p121, %p122
      %p124 = scmp.ne.s32.totalorder %s116, %s119
      %p125 = scmp.eq.s32.totalorder %s17, 0
      %p126 = por %p124, %p125
      %p127 = scmp.ne.s32.totalorder %s116, %s119
      %p128 = scmp.eq.s32.totalorder %s22, 1
      %p129 = por %p127, %p128
      %p130 = scmp.ne.s32.totalorder %s119, %s120
      %p131 = scmp.eq.s32.totalorder %s22, 0
      %p132 = por %p130, %p131
      %p133 = scmp.ne.s32.totalorder %s119, %s120
      %p134 = scmp.eq.s32.totalorder %s23, 1
      %p135 = por %p133, %p134
      %p137 = scmp.ne.s32.totalorder %s120, %s136
      %p138 = scmp.eq.s32.totalorder %s23, 0
      %p139 = por %p137, %p138
      %p140 = scmp.le.s32.totalorder 1, %s17
      %p141 = scmp.lt.s32.totalorder %s17, 3
      %p142 = pnand %p140, %p141
      %p143 = pneg %p142
      // Predicated region
      $region9: #{tpu_custom_call.1} parent=5 // pred_check
        _
      $region10: #{tpu_custom_call.1} parent=5 // pred_check_branch
        %145 = sbr.rel (%p142) target = $region12
      $region11: #{tpu_custom_call.1} parent=5 // pred_region
        %s146 = ssub.s32 %s17, 1
        // Predicated region
        $region13: #{tpu_custom_call.1} parent=11 // pred_check
          %p147 = pneg %p64
        $region14: #{tpu_custom_call.1} parent=11 // pred_check_branch
          %149 = sbr.rel (%p147) target = $region16
        $region15: #{tpu_custom_call.1} parent=11 // pred_region
          %s151 = ssub.s32 128, 128
          %152 = vsyncadd [#allocation6], %s151
          %s154 = sshll.u32 [#allocation5], 4
          %s155 = int_to_ptr.vmem [resolvable:$true] %s154
          %157 = dma.hbm_to_vmem [thread:$0]  %s1, 128, %s155, [#allocation6]
        $region16: #{tpu_custom_call.1} parent=11 // pred_fallthru
          _
        // Predicated region
        $region17: #{tpu_custom_call.1} parent=11 // pred_check
          %p158 = pneg %p85
        $region18: #{tpu_custom_call.1} parent=11 // pred_check_branch
          %160 = sbr.rel (%p158) target = $region20
        $region19: #{tpu_custom_call.1} parent=11 // pred_region
          _
        $region20: #{tpu_custom_call.1} parent=11 // pred_fallthru
          _
        // Predicated region
        $region21: #{tpu_custom_call.1} parent=11 // pred_check
          %p161 = pneg %p106
        $region22: #{tpu_custom_call.1} parent=11 // pred_check_branch
          %163 = sbr.rel (%p161) target = $region24
        $region23: #{tpu_custom_call.1} parent=11 // pred_region
          _
        $region24: #{tpu_custom_call.1} parent=11 // pred_fallthru
          _
      $region12: #{tpu_custom_call.1} parent=5 // pred_fallthru
        _
      %p164 = scmp.lt.s32.totalorder %s17, 2
      // Predicated region
      $region25: #{tpu_custom_call.1} parent=5 // pred_check
        %p165 = pneg %p164
      $region26: #{tpu_custom_call.1} parent=5 // pred_check_branch
        %167 = sbr.rel (%p165) target = $region28
      $region27: #{tpu_custom_call.1} parent=5 // pred_region
        // Predicated region
        $region29: #{tpu_custom_call.1} parent=27 // pred_check
          %p168 = pneg %p37
        $region30: #{tpu_custom_call.1} parent=27 // pred_check_branch
          %170 = sbr.rel (%p168) target = $region32
        $region31: #{tpu_custom_call.1} parent=27 // pred_region
          %s171 = sand.u32 %s27, 1
          %s172 = scalar_lea.sflag [#allocation3], %s171
          %s173 = sand.u32 %s27, 1
          %s174 = smul.addr %s173, 8
          %s175 = scalar_lea.vmem [#allocation2], %s174
          %s177 = ssub.s32 128, 128
          %178 = vsyncadd %s172, %s177
          %s179 = smul.addr %s17, 128
          %s180 = scalar_lea.hbm %s0, %s179
          %s182 = sshll.u32 %s175, 4
          %s183 = int_to_ptr.vmem [resolvable:$true] %s182
          %185 = dma.hbm_to_vmem [thread:$0]  %s180, 128, %s183, %s172
        $region32: #{tpu_custom_call.1} parent=27 // pred_fallthru
          _
      $region28: #{tpu_custom_call.1} parent=5 // pred_fallthru
        _
      %p186 = scmp.le.s32.totalorder 1, %s17
      %p187 = scmp.lt.s32.totalorder %s17, 3
      %p188 = pnand %p186, %p187
      %p189 = pneg %p188
      // Predicated region
      $region33: #{tpu_custom_call.1} parent=5 // pred_check
        _
      $region34: #{tpu_custom_call.1} parent=5 // pred_check_branch
        %191 = sbr.rel (%p188) target = $region36
      $region35: #{tpu_custom_call.1} parent=5 // pred_region
        %s192 = ssub.s32 %s17, 1
        %s193 = sand.u32 %s30, 1
        %s194 = scalar_lea.sflag [#allocation3], %s193
        %s195 = sand.u32 %s30, 1
        %s196 = smul.addr %s195, 8
        %s197 = scalar_lea.vmem [#allocation2], %s196
        // Predicated region
        $region37: #{tpu_custom_call.1} parent=35 // pred_check
          %p198 = pneg %p43
        $region38: #{tpu_custom_call.1} parent=35 // pred_check_branch
          %200 = sbr.rel (%p198) target = $region40
        $region39: #{tpu_custom_call.1} parent=35 // pred_region
          %201 = dma.done %s194, 128
        $region40: #{tpu_custom_call.1} parent=35 // pred_fallthru
          _
        // Predicated region
        $region41: #{tpu_custom_call.1} parent=35 // pred_check
          %p202 = pneg %p64
        $region42: #{tpu_custom_call.1} parent=35 // pred_check_branch
          %204 = sbr.rel (%p202) target = $region44
        $region43: #{tpu_custom_call.1} parent=35 // pred_region
          %205 = dma.done [#allocation6], 128
        $region44: #{tpu_custom_call.1} parent=35 // pred_fallthru
          _
        %s206 = sand.u32 %s30, 1
        %s207 = scalar_lea.sflag [#allocation3], %s206
        %s208 = sand.u32 %s30, 1
        %s209 = smul.addr %s208, 8
        %s210 = scalar_lea.vmem [#allocation2], %s209
        %p211 = pneg %p43
        %p212 = pneg %p40
        %p213 = pneg %p64
        %p214 = pneg %p61
        %p215 = pneg %p85
        %p216 = pneg %p82
        %p217 = pneg %p106
        %p218 = pneg %p103
        %p219 = pneg %p132
        %p220 = pneg %p129
        %s221 = sand.u32 %s119, 1
        %s222 = scalar_lea.sflag [#allocation4], %s221
        %s223 = sand.u32 %s119, 1
        %s224 = smul.addr %s223, 8
        %s225 = scalar_lea.vmem [#allocation7], %s224
        %v226 = vld [vmem:[%s197] sm:$0xff]
        %v227 = vld [vmem:[#allocation5] sm:$0xff]
        %v228 = vadd.f32 %v226, %v227
        %229 = vadd.xlane.f32.xlu0 %v228
        %v230 = vpop.xlane.xlu0 %229
        %v231 = vmul.f32 %v228, %v228
        %232 = vadd.xlane.f32.xlu0 %v231
        %v233 = vpop.xlane.xlu0 %232
        %v234 = vmul.f32 %v230, 0.0078125
        %v235 = vmul.f32 %v233, 0.0078125
        %v236 = vmul.f32 %v234, %v234
        %v237 = vsub.f32 %v235, %v236
        %v238 = vmax.f32 %v237, 0.0
        %v239 = vadd.f32 %v238, 1e-12
        %v240 = vrsqrt.pop %v239
        %v241 = vld [vmem:[%s2] sm:$0x1]
        %v242 = vld [vmem:[%s3] sm:$0x1]
        %v243 = vsub.f32 %v228, %v234
        %v244 = vmul.f32 %v243, %v240
        %v246 = vlaneseq
        %v247 = vshrl.u32 %v246, 7
        %v248 = vsub.s32 0, %v247
        %v249 = vrot.slane %v241, %v248
        %v251 = vmul.f32 %v244, %v249
        %v253 = vlaneseq
        %v254 = vshrl.u32 %v253, 7
        %v255 = vsub.s32 0, %v254
        %v256 = vrot.slane %v242, %v255
        %v258 = vadd.f32 %v251, %v256
        %259 = vst [vmem:[%s225] sm:$0xff] %v258
        %s260 = sand.u32 %s119, 1
        %s261 = scalar_lea.sflag [#allocation4], %s260
        %s262 = sand.u32 %s119, 1
        %s263 = smul.addr %s262, 8
        %s264 = scalar_lea.vmem [#allocation7], %s263
        // Predicated region
        $region45: #{tpu_custom_call.1} parent=35 // pred_check
          %p265 = pneg %p129
        $region46: #{tpu_custom_call.1} parent=35 // pred_check_branch
          %267 = sbr.rel (%p265) target = $region48
        $region47: #{tpu_custom_call.1} parent=35 // pred_region
          %s269 = ssub.s32 128, 128
          %270 = vsyncadd %s261, %s269
          %s271 = smul.addr %s22, 128
          %s272 = scalar_lea.hbm %s4, %s271
          %s274 = sshll.u32 %s264, 4
          %s275 = int_to_ptr.vmem [resolvable:$true] %s274
          %277 = dma.vmem_to_hbm [thread:$0]  %s275, 128, %s272, %s261
        $region48: #{tpu_custom_call.1} parent=35 // pred_fallthru
          _
      $region36: #{tpu_custom_call.1} parent=5 // pred_fallthru
        _
      %p278 = scmp.le.s32.totalorder 2, %s17
      // Predicated region
      $region49: #{tpu_custom_call.1} parent=5 // pred_check
        %p279 = pneg %p278
      $region50: #{tpu_custom_call.1} parent=5 // pred_check_branch
        %281 = sbr.rel (%p279) target = $region52
      $region51: #{tpu_custom_call.1} parent=5 // pred_region
        %s282 = ssub.s32 %s17, 2
        // Predicated region
        $region53: #{tpu_custom_call.1} parent=51 // pred_check
          %p283 = pneg %p135
        $region54: #{tpu_custom_call.1} parent=51 // pred_check_branch
          %285 = sbr.rel (%p283) target = $region56
        $region55: #{tpu_custom_call.1} parent=51 // pred_region
          %s286 = sand.u32 %s120, 1
          %s287 = scalar_lea.sflag [#allocation4], %s286
          %s288 = sand.u32 %s120, 1
          %s289 = smul.addr %s288, 8
          %s290 = scalar_lea.vmem [#allocation7], %s289
          %291 = dma.done %s287, 128
        $region56: #{tpu_custom_call.1} parent=51 // pred_fallthru
          _
      $region52: #{tpu_custom_call.1} parent=5 // pred_fallthru
        _
    $region6: #{tpu_custom_call.1} parent=1 // loop_footer
      %s21 = sadd.s32 1, %s17
    $region7: #{tpu_custom_call.1} parent=1 // loop_footer_branch
      %16 = sbr.rel target = $region3
    $region8: #{tpu_custom_call.1} parent=1 // loop_exit
      _
    %292 = vsyncpa [#allocation3], 1
    %s293 = scalar_lea.sflag [#allocation3], 1
    %294 = vsyncpa %s293, 1
    %295 = vsyncpa [#allocation6], 1
    %296 = vsyncpa [#allocation4], 1
    %s297 = scalar_lea.sflag [#allocation4], 1
    %298 = vsyncpa %s297, 1

</llo_original>
